<compile_context>
chip_gen: v6e
topology: v6e:2x2x1
jax: 0.10.0
libtpu: 0.0.40
codegen_flags: <defaults>
</compile_context>

<pallas_src>
import math

import jax
import jax.numpy as jnp
from jax.experimental import pallas as pl
from jax.experimental.pallas import tpu as pltpu


def _round_up(x, m):
    return ((x + m - 1) // m) * m


def dqn_kernel(xt_ref, w1_ref, b1_ref, w2_ref, b2_ref, w3_ref, b3_ref, o_ref):
    # xt: (8, TB) f32, batch on lanes (features 4..7 are zero padding).
    xt = xt_ref[...].astype(jnp.bfloat16)

    # ---- Layer 1: Linear(4, 64) + ReLU.  K padded 4->8; MXU, bf16 in / f32 acc.
    h1 = jnp.dot(w1_ref[...], xt, preferred_element_type=jnp.float32) + b1_ref[...]
    h1 = jnp.maximum(h1, 0.0)                                   # (64, TB) f32

    # ---- Layer 2: Linear(64, 64) + ReLU.  MXU, bf16 in / f32 acc, N = TB (lane-dense).
    h2 = (jnp.dot(w2_ref[...], h1.astype(jnp.bfloat16),
                  preferred_element_type=jnp.float32) + b2_ref[...])
    h2 = jnp.maximum(h2, 0.0)                                   # (64, TB) f32

    # ---- Layer 3: Linear(64, 1) as an M=1, N=TB MXU matmul (w3 stored as a (1,64) row).
    out = (jnp.dot(w3_ref[...], h2.astype(jnp.bfloat16),
                   preferred_element_type=jnp.float32) + b3_ref[...])   # (1, TB)
    o_ref[...] = out.astype(o_ref.dtype)


def _pick_tile(batch):
    pb = _round_up(batch, 128)
    # Big tiles amortize per-grid-step overhead on single-TC v5e/v6e...
    tb = min(2048, pb)
    # ...but keep >= 2 "parallel" grid steps when possible so v7x's 2 TCs both get work.
    if pb >= 256 and pb // tb < 2:
        tb = _round_up(pl.cdiv(pb, 2), 128)
    return tb


def deep_q_network(x, w1, b1, w2, b2, w3, b3, *, tb=None):
    """x: (B, 4) float32 -> (B, 1) float32.

    PyTorch layout: w1 (64,4), b1 (64,), w2 (64,64), b2 (64,), w3 (1,64), b3 (1,).
    """
    B, F = x.shape
    assert F == 4
    if tb is None:
        tb = _pick_tile(B)
    padded_b = _round_up(B, tb)

    # Layout plumbing (fusible into the input DMA via allow_input_fusion):
    # pad features 4 -> 8 (MXU-friendly K) + pad batch to the tile, then transpose so
    # batch rides the lane axis.
    xt = jnp.pad(x, ((0, padded_b - B), (0, 4))).T              # (8, padded_b) f32

    # Weights as bf16 MXU operands (f32 accumulation in-kernel); biases stay f32 columns.
    w1p = jnp.pad(w1, ((0, 0), (0, 4))).astype(jnp.bfloat16)    # (64, 8)
    w2b = w2.astype(jnp.bfloat16)                               # (64, 64)
    w3r = w3.astype(jnp.bfloat16)                               # (1, 64) row
    b1c = b1.reshape(64, 1).astype(jnp.float32)
    b2c = b2.reshape(64, 1).astype(jnp.float32)
    b3c = b3.reshape(1, 1).astype(jnp.float32)

    grid = (padded_b // tb,)

    flops = 2 * padded_b * (8 * 64 + 64 * 64 + 64 * 1)
    bytes_accessed = (xt.size * 4 + padded_b * 4                 # x in, out
                      + (w1p.size + w2b.size + w3r.size) * 2
                      + (b1c.size + b2c.size + b3c.size) * 4)

    out_t = pl.pallas_call(
        dqn_kernel,
        out_shape=jax.ShapeDtypeStruct((1, padded_b), jnp.float32),
        grid_spec=pltpu.PrefetchScalarGridSpec(
            num_scalar_prefetch=0,
            grid=grid,
            in_specs=[
                pl.BlockSpec((8, tb), lambda i: (0, i)),     # xT tile (batch on lanes)
                pl.BlockSpec((64, 8), lambda i: (0, 0)),     # w1 padded (resident)
                pl.BlockSpec((64, 1), lambda i: (0, 0)),     # b1
                pl.BlockSpec((64, 64), lambda i: (0, 0)),    # w2
                pl.BlockSpec((64, 1), lambda i: (0, 0)),     # b2
                pl.BlockSpec((1, 64), lambda i: (0, 0)),     # w3 row
                pl.BlockSpec((1, 1), lambda i: (0, 0)),      # b3
            ],
            out_specs=pl.BlockSpec((1, tb), lambda i: (0, i)),   # lane-dense output
        ),
        compiler_params=pltpu.CompilerParams(
            dimension_semantics=("parallel",),               # shard batch tiles across TCs
            allow_input_fusion=[True, False, False, False, False, False, False],
        ),
        cost_estimate=pl.CostEstimate(
            flops=flops, transcendentals=0, bytes_accessed=bytes_accessed),
    )(xt, w1p, b1c, w2b, b2c, w3r, b3c)

    return out_t[:, :B].T                                    # back to (B, 1)


def xavier_uniform(key, fan_out, fan_in, dtype=jnp.float32):
    # nn.init.xavier_uniform_ (gain=1): U(-a, a), a = sqrt(6 / (fan_in + fan_out)).
    bound = math.sqrt(6.0 / (fan_in + fan_out))
    return jax.random.uniform(key, (fan_out, fan_in), dtype=dtype,
                              minval=-bound, maxval=bound)


def init_params(key):
    # Exact PyTorch layout: weight (out, in), bias (out,), bias initialized to 0.
    k1, k2, k3 = jax.random.split(key, 3)
    w1 = xavier_uniform(k1, 64, 4)
    b1 = jnp.zeros((64,), jnp.float32)
    w2 = xavier_uniform(k2, 64, 64)
    b2 = jnp.zeros((64,), jnp.float32)
    w3 = xavier_uniform(k3, 1, 64)
    b3 = jnp.zeros((1,), jnp.float32)
    return w1, b1, w2, b2, w3, b3


def reference_forward(x, w1, b1, w2, b2, w3, b3):
    h1 = jnp.maximum(x @ w1.T + b1, 0.0)
    h2 = jnp.maximum(h1 @ w2.T + b2, 0.0)
    return h2 @ w3.T + b3


if __name__ == "__main__":
    key = jax.random.PRNGKey(0)
    k_params, k_x = jax.random.split(key)
    params = init_params(k_params)

    B = 256  # batch of states, each with 4 features (nn.Linear(4, 64))
    x = jax.random.normal(k_x, (B, 4), dtype=jnp.float32)

    # Default tile heuristic gives tb=128 -> grid=(2,): exercises the multi-step
    # "parallel" batch grid (both v7x TensorCores get a tile).
    out = deep_q_network(x, *params)
    out = jax.block_until_ready(out)

    ref = reference_forward(x, *params)
    assert out.shape == (B, 1), out.shape
    # Tolerance relaxed vs. the f32 reference because MXU operands are bf16
    # (accumulation is f32), per the performance review.
    assert jnp.allclose(out, ref, atol=3e-2, rtol=3e-2), (
        float(jnp.max(jnp.abs(out - ref))))

    print("KERNEL_OK")
</pallas_src>

<mosaic_0001>
module attributes {stable_mosaic.version = 11 : i64} {
  func.func @dqn_kernel(%arg0: i32, %arg1: memref<8x128xf32, #tpu.memory_space<vmem>>, %arg2: memref<64x8xbf16, #tpu.memory_space<vmem>>, %arg3: memref<64x1xf32, #tpu.memory_space<vmem>>, %arg4: memref<64x64xbf16, #tpu.memory_space<vmem>>, %arg5: memref<64x1xf32, #tpu.memory_space<vmem>>, %arg6: memref<1x64xbf16, #tpu.memory_space<vmem>>, %arg7: memref<1x1xf32, #tpu.memory_space<vmem>>, %arg8: memref<1x128xf32, #tpu.memory_space<vmem>>) attributes {dimension_semantics = [#tpu.dimension_semantics<parallel>], iteration_bounds = array<i64: 2>, scalar_prefetch = 0 : i64, scratch_operands = 0 : i64, tpu.core_type = #tpu.core_type<tc>, window_params = [{transform_indices = @transform_0, window_bounds = array<i64: 8, 128>}, {pipeline_mode = #tpu.pipeline_mode<synchronous>, transform_indices = @transform_1, window_bounds = array<i64: 64, 8>}, {pipeline_mode = #tpu.pipeline_mode<synchronous>, transform_indices = @transform_2, window_bounds = array<i64: 64, 1>}, {pipeline_mode = #tpu.pipeline_mode<synchronous>, transform_indices = @transform_3, window_bounds = array<i64: 64, 64>}, {pipeline_mode = #tpu.pipeline_mode<synchronous>, transform_indices = @transform_4, window_bounds = array<i64: 64, 1>}, {pipeline_mode = #tpu.pipeline_mode<synchronous>, transform_indices = @transform_5, window_bounds = array<i64: 1, 64>}, {pipeline_mode = #tpu.pipeline_mode<synchronous>, transform_indices = @transform_6, window_bounds = array<i64: 1, 1>}, {transform_indices = @transform_7, window_bounds = array<i64: 1, 128>}]} {
    %c0 = arith.constant 0 : index
    %c0_0 = arith.constant 0 : index
    %0 = vector.load %arg1[%c0, %c0_0] : memref<8x128xf32, #tpu.memory_space<vmem>>, vector<8x128xf32>
    %1 = arith.truncf %0 : vector<8x128xf32> to vector<8x128xbf16>
    %c0_1 = arith.constant 0 : index
    %c0_2 = arith.constant 0 : index
    %2 = vector.load %arg2[%c0_1, %c0_2] : memref<64x8xbf16, #tpu.memory_space<vmem>>, vector<64x8xbf16>
    %cst = arith.constant dense<0.000000e+00> : vector<64x128xf32>
    %3 = tpu.matmul %2, %1, %cst {dimension_numbers = #tpu.dot_dimension_numbers<[1], [0], [0], [1], [0, 0, 1, 1], [], []>} : vector<64x8xbf16>, vector<8x128xbf16>, vector<64x128xf32> -> vector<64x128xf32>
    %c0_3 = arith.constant 0 : index
    %c0_4 = arith.constant 0 : index
    %4 = vector.load %arg3[%c0_3, %c0_4] : memref<64x1xf32, #tpu.memory_space<vmem>>, vector<64x1xf32>
    %5 = vector.broadcast %4 : vector<64x1xf32> to vector<64x128xf32>
    %6 = arith.addf %3, %5 : vector<64x128xf32>
    %cst_5 = arith.constant 0.000000e+00 : f32
    %7 = vector.broadcast %cst_5 : f32 to vector<64x128xf32>
    %8 = arith.maximumf %6, %7 : vector<64x128xf32>
    %c0_6 = arith.constant 0 : index
    %c0_7 = arith.constant 0 : index
    %9 = vector.load %arg4[%c0_6, %c0_7] : memref<64x64xbf16, #tpu.memory_space<vmem>>, vector<64x64xbf16>
    %10 = arith.truncf %8 : vector<64x128xf32> to vector<64x128xbf16>
    %cst_8 = arith.constant dense<0.000000e+00> : vector<64x128xf32>
    %11 = tpu.matmul %9, %10, %cst_8 {dimension_numbers = #tpu.dot_dimension_numbers<[1], [0], [0], [1], [0, 0, 1, 1], [], []>} : vector<64x64xbf16>, vector<64x128xbf16>, vector<64x128xf32> -> vector<64x128xf32>
    %c0_9 = arith.constant 0 : index
    %c0_10 = arith.constant 0 : index
    %12 = vector.load %arg5[%c0_9, %c0_10] : memref<64x1xf32, #tpu.memory_space<vmem>>, vector<64x1xf32>
    %13 = vector.broadcast %12 : vector<64x1xf32> to vector<64x128xf32>
    %14 = arith.addf %11, %13 : vector<64x128xf32>
    %cst_11 = arith.constant 0.000000e+00 : f32
    %15 = vector.broadcast %cst_11 : f32 to vector<64x128xf32>
    %16 = arith.maximumf %14, %15 : vector<64x128xf32>
    %c0_12 = arith.constant 0 : index
    %c0_13 = arith.constant 0 : index
    %17 = vector.load %arg6[%c0_12, %c0_13] : memref<1x64xbf16, #tpu.memory_space<vmem>>, vector<1x64xbf16>
    %18 = arith.truncf %16 : vector<64x128xf32> to vector<64x128xbf16>
    %cst_14 = arith.constant dense<0.000000e+00> : vector<1x128xf32>
    %19 = tpu.matmul %17, %18, %cst_14 {dimension_numbers = #tpu.dot_dimension_numbers<[1], [0], [0], [1], [0, 0, 1, 1], [], []>} : vector<1x64xbf16>, vector<64x128xbf16>, vector<1x128xf32> -> vector<1x128xf32>
    %c0_15 = arith.constant 0 : index
    %c0_16 = arith.constant 0 : index
    %20 = vector.load %arg7[%c0_15, %c0_16] : memref<1x1xf32, #tpu.memory_space<vmem>>, vector<1x1xf32>
    %21 = vector.broadcast %20 : vector<1x1xf32> to vector<1x128xf32>
    %22 = arith.addf %19, %21 : vector<1x128xf32>
    %c0_17 = arith.constant 0 : index
    %c0_18 = arith.constant 0 : index
    %23 = vector.load %arg8[%c0_17, %c0_18] : memref<1x128xf32, #tpu.memory_space<vmem>>, vector<1x128xf32>
    tpu.vector_store %arg8[%c0_17, %c0_18], %22 {strides = array<i32>} : memref<1x128xf32, #tpu.memory_space<vmem>>, vector<1x128xf32>,
    return
  }
  func.func @transform_0(%arg0: i32) -> (i32, i32) {
    %c0_i32 = arith.constant 0 : i32
    %c0_i32_0 = arith.constant 0 : i32
    return %c0_i32, %arg0 : i32, i32
  }
  func.func @transform_1(%arg0: i32) -> (i32, i32) {
    %c0_i32 = arith.constant 0 : i32
    %c0_i32_0 = arith.constant 0 : i32
    %c0_i32_1 = arith.constant 0 : i32
    return %c0_i32, %c0_i32_0 : i32, i32
  }
  func.func @transform_2(%arg0: i32) -> (i32, i32) {
    %c0_i32 = arith.constant 0 : i32
    %c0_i32_0 = arith.constant 0 : i32
    %c0_i32_1 = arith.constant 0 : i32
    return %c0_i32, %c0_i32_0 : i32, i32
  }
  func.func @transform_3(%arg0: i32) -> (i32, i32) {
    %c0_i32 = arith.constant 0 : i32
    %c0_i32_0 = arith.constant 0 : i32
    %c0_i32_1 = arith.constant 0 : i32
    return %c0_i32, %c0_i32_0 : i32, i32
  }
  func.func @transform_4(%arg0: i32) -> (i32, i32) {
    %c0_i32 = arith.constant 0 : i32
    %c0_i32_0 = arith.constant 0 : i32
    %c0_i32_1 = arith.constant 0 : i32
    return %c0_i32, %c0_i32_0 : i32, i32
  }
  func.func @transform_5(%arg0: i32) -> (i32, i32) {
    %c0_i32 = arith.constant 0 : i32
    %c0_i32_0 = arith.constant 0 : i32
    %c0_i32_1 = arith.constant 0 : i32
    return %c0_i32, %c0_i32_0 : i32, i32
  }
  func.func @transform_6(%arg0: i32) -> (i32, i32) {
    %c0_i32 = arith.constant 0 : i32
    %c0_i32_0 = arith.constant 0 : i32
    %c0_i32_1 = arith.constant 0 : i32
    return %c0_i32, %c0_i32_0 : i32, i32
  }
  func.func @transform_7(%arg0: i32) -> (i32, i32) {
    %c0_i32 = arith.constant 0 : i32
    %c0_i32_0 = arith.constant 0 : i32
    return %c0_i32, %arg0 : i32, i32
  }
}

</mosaic_0001>

<llo_original>
// kernel: tpu_custom_call.1
$region0: #{tpu_custom_call.1}
  #allocation0 [shape = 'u32[]', space=smem, size = 0x4, offset = 0x4, fixed_abs, tag = 'smem constant byte address 0x4 - core index']
  #allocation1 [shape = 'u32[144,128]{1,0:T(1,128)}', space=vmem, size = 0x12000, scoped, tag = 'internal scratch']
  #allocation2 [shape = 'f32[1,1]{1,0:T(1,128)S(1)}', space=vmem, size = 0x200, scoped, tag = 'scoped memory for tpu_custom_call.1']
  %s0 = inlined_call_operand.vmem [shape: f32[8,256], index: 0, kind: input, shape index: {}]
  %s1 = inlined_call_operand.vmem [shape: bf16[64,8], index: 1, kind: input, shape index: {}]
  %s2 = inlined_call_operand.vmem [shape: f32[64,1], index: 2, kind: input, shape index: {}]
  %s3 = inlined_call_operand.vmem [shape: bf16[64,64], index: 3, kind: input, shape index: {}]
  %s4 = inlined_call_operand.vmem [shape: f32[64,1], index: 4, kind: input, shape index: {}]
  %s5 = inlined_call_operand.vmem [shape: bf16[1,64], index: 5, kind: input, shape index: {}]
  %s6 = inlined_call_operand.<no memory space> [shape: f32[1,1], index: 6, kind: input, shape index: {}]
  %s7 = inlined_call_operand.hbm [shape: f32[1,256], index: 7, kind: output, shape index: {}]
  %s8 = sld [smem:[#allocation0]]
  $region61: #{tpu_custom_call.1} parent=0
    _
  %s10 = ssub.s32 1, %s8
  %s11 = scalar_select 0, %s10, %s8
  %v12 = vstv %s6
  %13 = vst [vmem:[#allocation2] sm:$0x1] %v12
  $region1: #{tpu_custom_call.1} parent=0
    #allocation3 [shape = 'u8[1024]{0}', space=vmem, size = 0x400, scoped, tag = 'output window, operand 0']
    #allocation4 [shape = 's32[2]{0}', space=sflag, size = 0x8, scoped, tag = 'scoped memory for tpu_custom_call.1']
    %14 = vsyncpa [#allocation4], 0
    %s15 = scalar_lea.sflag [#allocation4], 1
    %16 = vsyncpa %s15, 0
    loop: start=0, step=1, limit=4
    $region2: #{tpu_custom_call.1} parent=1 // loop_pre_header
      _
    $region3: #{tpu_custom_call.1} parent=1 // loop_header
      %s18 = sphi 0, %s22
      %p19 = scmp.ge.s32.totalorder %s18, 4
      %s28 = sphi 0, %s30
      %s31 = sphi 0, %s28
      %s32 = sphi 0, %s31
      %s48 = sphi 0, %s32
      %s52 = sphi 0, %s52
      %s54 = sphi 0, %s52
      %s55 = sphi 0, %s54
      %s69 = sphi 0, %s55
      %s73 = sphi 0, %s73
      %s75 = sphi 0, %s73
      %s76 = sphi 0, %s75
      %s90 = sphi 0, %s76
      %s94 = sphi 0, %s94
      %s96 = sphi 0, %s94
      %s97 = sphi 0, %s96
      %s111 = sphi 0, %s97
      %s115 = sphi 0, %s115
      %s117 = sphi 0, %s115
      %s118 = sphi 0, %s117
      %s132 = sphi 0, %s118
      %s136 = sphi 0, %s136
      %s138 = sphi 0, %s136
      %s139 = sphi 0, %s138
      %s153 = sphi 0, %s139
      %s157 = sphi 0, %s157
      %s159 = sphi 0, %s157
      %s160 = sphi 0, %s159
      %s174 = sphi 0, %s160
      %s180 = sphi 0, %s182
      %s183 = sphi 0, %s180
      %s184 = sphi 0, %s183
      %s200 = sphi 0, %s184
    $region4: #{tpu_custom_call.1} parent=1 // loop_header_branch
      %21 = sbr.rel (%p19) target = $region8
    $region5: #{tpu_custom_call.1} parent=1 // loop_body
      %s23 = ssub.s32 %s18, 1
      %s24 = ssub.s32 %s18, 2
      %s25 = sadd.s32 %s18, 1
      %s26 = ssub.s32 %s18, %s25
      %p27 = scmp.eq.s32.totalorder %s26, 0
      %s29 = sadd.s32 %s28, 1
      %s30 = scalar_select %p27, %s28, %s29
      %p33 = pneg %p27
      %p34 = scmp.eq.s32.totalorder %s18, 1
      %p35 = por %p33, %p34
      %p36 = scmp.ne.s32.totalorder %s28, %s31
      %p37 = scmp.eq.s32.totalorder %s18, 0
      %p38 = por %p36, %p37
      %p39 = scmp.ne.s32.totalorder %s28, %s31
      %p40 = scmp.eq.s32.totalorder %s23, 1
      %p41 = por %p39, %p40
      %p42 = scmp.ne.s32.totalorder %s31, %s32
      %p43 = scmp.eq.s32.totalorder %s23, 0
      %p44 = por %p42, %p43
      %p45 = scmp.ne.s32.totalorder %s31, %s32
      %p46 = scmp.eq.s32.totalorder %s24, 1
      %p47 = por %p45, %p46
      %p49 = scmp.ne.s32.totalorder %s32, %s48
      %p50 = scmp.eq.s32.totalorder %s24, 0
      %p51 = por %p49, %p50
      %s53 = sadd.s32 %s52, 1
      %p56 = scmp.eq.s32.totalorder %s18, 1
      %p57 = scmp.ne.s32.totalorder %s52, %s54
      %p58 = scmp.eq.s32.totalorder %s18, 0
      %p59 = por %p57, %p58
      %p60 = scmp.ne.s32.totalorder %s52, %s54
      %p61 = scmp.eq.s32.totalorder %s23, 1
      %p62 = por %p60, %p61
      %p63 = scmp.ne.s32.totalorder %s54, %s55
      %p64 = scmp.eq.s32.totalorder %s23, 0
      %p65 = por %p63, %p64
      %p66 = scmp.ne.s32.totalorder %s54, %s55
      %p67 = scmp.eq.s32.totalorder %s24, 1
      %p68 = por %p66, %p67
      %p70 = scmp.ne.s32.totalorder %s55, %s69
      %p71 = scmp.eq.s32.totalorder %s24, 0
      %p72 = por %p70, %p71
      %s74 = sadd.s32 %s73, 1
      %p77 = scmp.eq.s32.totalorder %s18, 1
      %p78 = scmp.ne.s32.totalorder %s73, %s75
      %p79 = scmp.eq.s32.totalorder %s18, 0
      %p80 = por %p78, %p79
      %p81 = scmp.ne.s32.totalorder %s73, %s75
      %p82 = scmp.eq.s32.totalorder %s23, 1
      %p83 = por %p81, %p82
      %p84 = scmp.ne.s32.totalorder %s75, %s76
      %p85 = scmp.eq.s32.totalorder %s23, 0
      %p86 = por %p84, %p85
      %p87 = scmp.ne.s32.totalorder %s75, %s76
      %p88 = scmp.eq.s32.totalorder %s24, 1
      %p89 = por %p87, %p88
      %p91 = scmp.ne.s32.totalorder %s76, %s90
      %p92 = scmp.eq.s32.totalorder %s24, 0
      %p93 = por %p91, %p92
      %s95 = sadd.s32 %s94, 1
      %p98 = scmp.eq.s32.totalorder %s18, 1
      %p99 = scmp.ne.s32.totalorder %s94, %s96
      %p100 = scmp.eq.s32.totalorder %s18, 0
      %p101 = por %p99, %p100
      %p102 = scmp.ne.s32.totalorder %s94, %s96
      %p103 = scmp.eq.s32.totalorder %s23, 1
      %p104 = por %p102, %p103
      %p105 = scmp.ne.s32.totalorder %s96, %s97
      %p106 = scmp.eq.s32.totalorder %s23, 0
      %p107 = por %p105, %p106
      %p108 = scmp.ne.s32.totalorder %s96, %s97
      %p109 = scmp.eq.s32.totalorder %s24, 1
      %p110 = por %p108, %p109
      %p112 = scmp.ne.s32.totalorder %s97, %s111
      %p113 = scmp.eq.s32.totalorder %s24, 0
      %p114 = por %p112, %p113
      %s116 = sadd.s32 %s115, 1
      %p119 = scmp.eq.s32.totalorder %s18, 1
      %p120 = scmp.ne.s32.totalorder %s115, %s117
      %p121 = scmp.eq.s32.totalorder %s18, 0
      %p122 = por %p120, %p121
      %p123 = scmp.ne.s32.totalorder %s115, %s117
      %p124 = scmp.eq.s32.totalorder %s23, 1
      %p125 = por %p123, %p124
      %p126 = scmp.ne.s32.totalorder %s117, %s118
      %p127 = scmp.eq.s32.totalorder %s23, 0
      %p128 = por %p126, %p127
      %p129 = scmp.ne.s32.totalorder %s117, %s118
      %p130 = scmp.eq.s32.totalorder %s24, 1
      %p131 = por %p129, %p130
      %p133 = scmp.ne.s32.totalorder %s118, %s132
      %p134 = scmp.eq.s32.totalorder %s24, 0
      %p135 = por %p133, %p134
      %s137 = sadd.s32 %s136, 1
      %p140 = scmp.eq.s32.totalorder %s18, 1
      %p141 = scmp.ne.s32.totalorder %s136, %s138
      %p142 = scmp.eq.s32.totalorder %s18, 0
      %p143 = por %p141, %p142
      %p144 = scmp.ne.s32.totalorder %s136, %s138
      %p145 = scmp.eq.s32.totalorder %s23, 1
      %p146 = por %p144, %p145
      %p147 = scmp.ne.s32.totalorder %s138, %s139
      %p148 = scmp.eq.s32.totalorder %s23, 0
      %p149 = por %p147, %p148
      %p150 = scmp.ne.s32.totalorder %s138, %s139
      %p151 = scmp.eq.s32.totalorder %s24, 1
      %p152 = por %p150, %p151
      %p154 = scmp.ne.s32.totalorder %s139, %s153
      %p155 = scmp.eq.s32.totalorder %s24, 0
      %p156 = por %p154, %p155
      %s158 = sadd.s32 %s157, 1
      %p161 = scmp.eq.s32.totalorder %s18, 1
      %p162 = scmp.ne.s32.totalorder %s157, %s159
      %p163 = scmp.eq.s32.totalorder %s18, 0
      %p164 = por %p162, %p163
      %p165 = scmp.ne.s32.totalorder %s157, %s159
      %p166 = scmp.eq.s32.totalorder %s23, 1
      %p167 = por %p165, %p166
      %p168 = scmp.ne.s32.totalorder %s159, %s160
      %p169 = scmp.eq.s32.totalorder %s23, 0
      %p170 = por %p168, %p169
      %p171 = scmp.ne.s32.totalorder %s159, %s160
      %p172 = scmp.eq.s32.totalorder %s24, 1
      %p173 = por %p171, %p172
      %p175 = scmp.ne.s32.totalorder %s160, %s174
      %p176 = scmp.eq.s32.totalorder %s24, 0
      %p177 = por %p175, %p176
      %s178 = ssub.s32 %s18, %s25
      %p179 = scmp.eq.s32.totalorder %s178, 0
      %s181 = sadd.s32 %s180, 1
      %s182 = scalar_select %p179, %s180, %s181
      %p185 = pneg %p179
      %p186 = scmp.eq.s32.totalorder %s18, 1
      %p187 = por %p185, %p186
      %p188 = scmp.ne.s32.totalorder %s180, %s183
      %p189 = scmp.eq.s32.totalorder %s18, 0
      %p190 = por %p188, %p189
      %p191 = scmp.ne.s32.totalorder %s180, %s183
      %p192 = scmp.eq.s32.totalorder %s23, 1
      %p193 = por %p191, %p192
      %p194 = scmp.ne.s32.totalorder %s183, %s184
      %p195 = scmp.eq.s32.totalorder %s23, 0
      %p196 = por %p194, %p195
      %p197 = scmp.ne.s32.totalorder %s183, %s184
      %p198 = scmp.eq.s32.totalorder %s24, 1
      %p199 = por %p197, %p198
      %p201 = scmp.ne.s32.totalorder %s184, %s200
      %p202 = scmp.eq.s32.totalorder %s24, 0
      %p203 = por %p201, %p202
      %p204 = scmp.le.s32.totalorder 1, %s18
      %p205 = scmp.lt.s32.totalorder %s18, 3
      %p206 = pnand %p204, %p205
      %p207 = pneg %p206
      // Predicated region
      $region9: #{tpu_custom_call.1} parent=5 // pred_check
        _
      $region10: #{tpu_custom_call.1} parent=5 // pred_check_branch
        %209 = sbr.rel (%p206) target = $region12
      $region11: #{tpu_custom_call.1} parent=5 // pred_region
        %s210 = ssub.s32 %s18, 1
        // Predicated region
        $region13: #{tpu_custom_call.1} parent=11 // pred_check
          %p211 = pneg %p65
        $region14: #{tpu_custom_call.1} parent=11 // pred_check_branch
          %213 = sbr.rel (%p211) target = $region16
        $region15: #{tpu_custom_call.1} parent=11 // pred_region
          _
        $region16: #{tpu_custom_call.1} parent=11 // pred_fallthru
          _
        // Predicated region
        $region17: #{tpu_custom_call.1} parent=11 // pred_check
          %p214 = pneg %p86
        $region18: #{tpu_custom_call.1} parent=11 // pred_check_branch
          %216 = sbr.rel (%p214) target = $region20
        $region19: #{tpu_custom_call.1} parent=11 // pred_region
          _
        $region20: #{tpu_custom_call.1} parent=11 // pred_fallthru
          _
        // Predicated region
        $region21: #{tpu_custom_call.1} parent=11 // pred_check
          %p217 = pneg %p107
        $region22: #{tpu_custom_call.1} parent=11 // pred_check_branch
          %219 = sbr.rel (%p217) target = $region24
        $region23: #{tpu_custom_call.1} parent=11 // pred_region
          _
        $region24: #{tpu_custom_call.1} parent=11 // pred_fallthru
          _
        // Predicated region
        $region25: #{tpu_custom_call.1} parent=11 // pred_check
          %p220 = pneg %p128
        $region26: #{tpu_custom_call.1} parent=11 // pred_check_branch
          %222 = sbr.rel (%p220) target = $region28
        $region27: #{tpu_custom_call.1} parent=11 // pred_region
          _
        $region28: #{tpu_custom_call.1} parent=11 // pred_fallthru
          _
        // Predicated region
        $region29: #{tpu_custom_call.1} parent=11 // pred_check
          %p223 = pneg %p149
        $region30: #{tpu_custom_call.1} parent=11 // pred_check_branch
          %225 = sbr.rel (%p223) target = $region32
        $region31: #{tpu_custom_call.1} parent=11 // pred_region
          _
        $region32: #{tpu_custom_call.1} parent=11 // pred_fallthru
          _
        // Predicated region
        $region33: #{tpu_custom_call.1} parent=11 // pred_check
          %p226 = pneg %p170
        $region34: #{tpu_custom_call.1} parent=11 // pred_check_branch
          %228 = sbr.rel (%p226) target = $region36
        $region35: #{tpu_custom_call.1} parent=11 // pred_region
          _
        $region36: #{tpu_custom_call.1} parent=11 // pred_fallthru
          _
      $region12: #{tpu_custom_call.1} parent=5 // pred_fallthru
        _
      %p229 = scmp.lt.s32.totalorder %s18, 2
      // Predicated region
      $region37: #{tpu_custom_call.1} parent=5 // pred_check
        %p230 = pneg %p229
      $region38: #{tpu_custom_call.1} parent=5 // pred_check_branch
        %232 = sbr.rel (%p230) target = $region40
      $region39: #{tpu_custom_call.1} parent=5 // pred_region
        // Predicated region
        $region41: #{tpu_custom_call.1} parent=39 // pred_check
          %p233 = pneg %p38
        $region42: #{tpu_custom_call.1} parent=39 // pred_check_branch
          %235 = sbr.rel (%p233) target = $region44
        $region43: #{tpu_custom_call.1} parent=39 // pred_region
          %p236 = scmp.lt.s32.totalorder %s18, 1
          %s237 = scalar_select %p236, %s18, 1
          %s238 = smul.addr %s237, 8
          %s239 = scalar_lea.vmem %s0, %s238
        $region44: #{tpu_custom_call.1} parent=39 // pred_fallthru
          _
      $region40: #{tpu_custom_call.1} parent=5 // pred_fallthru
        _
      %p240 = scmp.le.s32.totalorder 1, %s18
      %p241 = scmp.lt.s32.totalorder %s18, 3
      %p242 = pnand %p240, %p241
      %p243 = pneg %p242
      // Predicated region
      $region45: #{tpu_custom_call.1} parent=5 // pred_check
        _
      $region46: #{tpu_custom_call.1} parent=5 // pred_check_branch
        %245 = sbr.rel (%p242) target = $region48
      $region47: #{tpu_custom_call.1} parent=5 // pred_region
        %s246 = ssub.s32 %s18, 1
        %p247 = scmp.lt.s32.totalorder %s23, 1
        %s248 = scalar_select %p247, %s23, 1
        %s249 = smul.addr %s248, 8
        %s250 = scalar_lea.vmem %s0, %s249
        %p251 = pneg %p44
        %p252 = pneg %p41
        %p253 = pneg %p65
        %p254 = pneg %p62
        %p255 = pneg %p86
        %p256 = pneg %p83
        %p257 = pneg %p107
        %p258 = pneg %p104
        %p259 = pneg %p128
        %p260 = pneg %p125
        %p261 = pneg %p149
        %p262 = pneg %p146
        %p263 = pneg %p170
        %p264 = pneg %p167
        %p265 = pneg %p196
        %p266 = pneg %p193
        %s267 = sand.u32 %s183, 1
        %s268 = scalar_lea.sflag [#allocation4], %s267
        %s269 = sand.u32 %s183, 1
        %s270 = scalar_lea.vmem [#allocation3], %s269
        %p271 = scmp.lt.s32.totalorder %s23, 1
        %s272 = scalar_select %p271, %s23, 1
        %s273 = smul.addr %s272, 8
        %s274 = scalar_lea.vmem %s0, %s273
        %v276 = vld [vmem:[%s274] sm:$0xff]
        %v277 = vpack.c.bf16 %v276, %v276
        %v278 = vld [vmem:[%s1] sm:$0xf]
        %v279 = vld [vmem:[%s1 + $0x4] sm:$0xf]
        %v280 = vld [vmem:[%s1 + $0x8] sm:$0xf]
        %v281 = vld [vmem:[%s1 + $0xc] sm:$0xf]
        %v282 = vld [vmem:[%s1 + $0x10] sm:$0xf]
        %v283 = vld [vmem:[%s1 + $0x14] sm:$0xf]
        %v284 = vld [vmem:[%s1 + $0x18] sm:$0xf]
        %v285 = vld [vmem:[%s1 + $0x1c] sm:$0xf]
        %v286 = vld [vmem:[%s2] sm:$0xff]
        %v287 = vld [vmem:[%s2 + $0x8] sm:$0xff]
        %v288 = vld [vmem:[%s2 + $0x10] sm:$0xff]
        %v289 = vld [vmem:[%s2 + $0x18] sm:$0xff]
        %v290 = vld [vmem:[%s2 + $0x20] sm:$0xff]
        %v291 = vld [vmem:[%s2 + $0x28] sm:$0xff]
        %v292 = vld [vmem:[%s2 + $0x30] sm:$0xff]
        %v293 = vld [vmem:[%s2 + $0x38] sm:$0xff]
        %295 = vset.pattern.permute.xlu0 0
        %296 = vperm.xlu0 %295, %v286
        %v297 = vpop.permute.xlu0 %296
        %300 = vset.pattern.permute.xlu0 0
        %301 = vperm.xlu0 %300, %v287
        %v302 = vpop.permute.xlu0 %301
        %305 = vset.pattern.permute.xlu0 0
        %306 = vperm.xlu0 %305, %v288
        %v307 = vpop.permute.xlu0 %306
        %310 = vset.pattern.permute.xlu0 0
        %311 = vperm.xlu0 %310, %v289
        %v312 = vpop.permute.xlu0 %311
        %315 = vset.pattern.permute.xlu0 0
        %316 = vperm.xlu0 %315, %v290
        %v317 = vpop.permute.xlu0 %316
        %320 = vset.pattern.permute.xlu0 0
        %321 = vperm.xlu0 %320, %v291
        %v322 = vpop.permute.xlu0 %321
        %325 = vset.pattern.permute.xlu0 0
        %326 = vperm.xlu0 %325, %v292
        %v327 = vpop.permute.xlu0 %326
        %330 = vset.pattern.permute.xlu0 0
        %331 = vperm.xlu0 %330, %v293
        %v332 = vpop.permute.xlu0 %331
        %v342 = vunpack.c.l.b16 %v278
        %v343 = vunpack.c.l.b16 %v279
        %v344 = vunpack.c.l.b16 %v280
        %v345 = vunpack.c.l.b16 %v281
        %v346 = vunpack.c.l.b16 %v282
        %v347 = vunpack.c.l.b16 %v283
        %v348 = vunpack.c.l.b16 %v284
        %v349 = vunpack.c.l.b16 %v285
        %v350 = vpack.c.b16 %v343, %v342
        %v351 = vpack.c.b16 %v345, %v344
        %v352 = vpack.c.b16 %v347, %v346
        %v353 = vpack.c.b16 %v349, %v348
        %vm354 = vcmask 64512
        %v356 = vsel %vm354, %v350, 0
        %v359 = vsel %vm354, %v351, 0
        %v362 = vsel %vm354, %v352, 0
        %v365 = vsel %vm354, %v353, 0
        %vm367 = vcmask 1043456
        %v369 = vsel %vm367, %v277, 0
        %371 = vmatprep.subr.bf16.mxu0 0
        %372 = vmatpush1.bf16.msra.mxu0 0
        %373 = vmatprep.subr.bf16.mxu0 0
        %374 = vmatpush1.bf16.msra.mxu0 0
        %375 = vmatprep.subr.bf16.mxu0 0
        %376 = vmatpush1.bf16.msra.mxu0 0
        %377 = vmatprep.subr.bf16.mxu0 0
        %378 = vmatpush1.bf16.msra.mxu0 0
        %379 = vmatprep.subr.bf16.mxu0 0
        %380 = vmatpush1.bf16.msra.mxu0 0
        %381 = vmatprep.subr.bf16.mxu0 0
        %382 = vmatpush1.bf16.msra.mxu0 0
        %383 = vmatprep.subr.bf16.mxu0 0
        %384 = vmatpush1.bf16.msra.mxu0 0
        %385 = vmatprep.subr.bf16.mxu0 0
        %386 = vmatpush1.bf16.msra.mxu0 %v369
        %387 = vmatprep.subr.bf16.mxu0 0
        %388 = vmatpush2.bf16.msra.mxu0 0
        %389 = vmatprep.subr.bf16.mxu0 0
        %390 = vmatpush2.bf16.msra.mxu0 0
        %391 = vmatprep.subr.bf16.mxu0 0
        %392 = vmatpush2.bf16.msra.mxu0 0
        %393 = vmatprep.subr.bf16.mxu0 0
        %394 = vmatpush2.bf16.msra.mxu0 0
        %395 = vmatprep.subr.bf16.mxu0 0
        %396 = vmatpush2.bf16.msra.mxu0 0
        %397 = vmatprep.subr.bf16.mxu0 0
        %398 = vmatpush2.bf16.msra.mxu0 0
        %399 = vmatprep.subr.bf16.mxu0 0
        %400 = vmatpush2.bf16.msra.mxu0 0
        %401 = vmatprep.subr.bf16.mxu0 0
        %402 = vmatpush2.bf16.msra.mxu0 0
        %403 = vmatprep.mubr.bf16.mxu0 0
        %404 = vmatmul.mubr.bf16.gmra.mxu0 %v356
        %v405 = vpop.f32.mrf.mxu0
        %v406 = vadd.f32 %v297, %v405
        %v407 = vpop.f32.mrf.mxu0
        %v408 = vpop.f32.mrf.mxu0
        %v409 = vadd.f32 %v302, %v408
        %v410 = vpop.f32.mrf.mxu0
        %411 = vmatprep.mubr.bf16.mxu0 0
        %412 = vmatmul.mubr.bf16.gmra.mxu0 %v359
        %v413 = vpop.f32.mrf.mxu0
        %v414 = vadd.f32 %v307, %v413
        %v415 = vpop.f32.mrf.mxu0
        %v416 = vpop.f32.mrf.mxu0
        %v417 = vadd.f32 %v312, %v416
        %v418 = vpop.f32.mrf.mxu0
        %419 = vmatprep.mubr.bf16.mxu0 0
        %420 = vmatmul.mubr.bf16.gmra.mxu0 %v362
        %v421 = vpop.f32.mrf.mxu0
        %v422 = vadd.f32 %v317, %v421
        %v423 = vpop.f32.mrf.mxu0
        %v424 = vpop.f32.mrf.mxu0
        %v425 = vadd.f32 %v322, %v424
        %v426 = vpop.f32.mrf.mxu0
        %427 = vmatprep.mubr.bf16.mxu0 0
        %428 = vmatmul.mubr.bf16.gmra.mxu0 %v365
        %v429 = vpop.f32.mrf.mxu0
        %v430 = vadd.f32 %v327, %v429
        %v431 = vpop.f32.mrf.mxu0
        %v432 = vpop.f32.mrf.mxu0
        %v433 = vadd.f32 %v332, %v432
        %v434 = vpop.f32.mrf.mxu0
        %435 = vdwg.mxu0
        %v436 = vmax.f32 %v406, 0.0
        %v437 = vmax.f32 %v409, 0.0
        %v438 = vmax.f32 %v414, 0.0
        %v439 = vmax.f32 %v417, 0.0
        %v440 = vmax.f32 %v422, 0.0
        %v441 = vmax.f32 %v425, 0.0
        %v442 = vmax.f32 %v430, 0.0
        %v443 = vmax.f32 %v433, 0.0
        %v444 = vld [vmem:[%s3] sm:$0xf]
        %v445 = vld [vmem:[%s3 + $0x4] sm:$0xf]
        %v446 = vld [vmem:[%s3 + $0x8] sm:$0xf]
        %v447 = vld [vmem:[%s3 + $0xc] sm:$0xf]
        %v448 = vld [vmem:[%s3 + $0x10] sm:$0xf]
        %v449 = vld [vmem:[%s3 + $0x14] sm:$0xf]
        %v450 = vld [vmem:[%s3 + $0x18] sm:$0xf]
        %v451 = vld [vmem:[%s3 + $0x1c] sm:$0xf]
        %v452 = vpack.c.bf16 %v437, %v436
        %v453 = vpack.c.bf16 %v439, %v438
        %v454 = vpack.c.bf16 %v441, %v440
        %v455 = vpack.c.bf16 %v443, %v442
        %v456 = vld [vmem:[%s4] sm:$0xff]
        %v457 = vld [vmem:[%s4 + $0x8] sm:$0xff]
        %v458 = vld [vmem:[%s4 + $0x10] sm:$0xff]
        %v459 = vld [vmem:[%s4 + $0x18] sm:$0xff]
        %v460 = vld [vmem:[%s4 + $0x20] sm:$0xff]
        %v461 = vld [vmem:[%s4 + $0x28] sm:$0xff]
        %v462 = vld [vmem:[%s4 + $0x30] sm:$0xff]
        %v463 = vld [vmem:[%s4 + $0x38] sm:$0xff]
        %465 = vset.pattern.permute.xlu0 0
        %466 = vperm.xlu0 %465, %v456
        %v467 = vpop.permute.xlu0 %466
        %470 = vset.pattern.permute.xlu0 0
        %471 = vperm.xlu0 %470, %v457
        %v472 = vpop.permute.xlu0 %471
        %475 = vset.pattern.permute.xlu0 0
        %476 = vperm.xlu0 %475, %v458
        %v477 = vpop.permute.xlu0 %476
        %480 = vset.pattern.permute.xlu0 0
        %481 = vperm.xlu0 %480, %v459
        %v482 = vpop.permute.xlu0 %481
        %485 = vset.pattern.permute.xlu0 0
        %486 = vperm.xlu0 %485, %v460
        %v487 = vpop.permute.xlu0 %486
        %490 = vset.pattern.permute.xlu0 0
        %491 = vperm.xlu0 %490, %v461
        %v492 = vpop.permute.xlu0 %491
        %495 = vset.pattern.permute.xlu0 0
        %496 = vperm.xlu0 %495, %v462
        %v497 = vpop.permute.xlu0 %496
        %500 = vset.pattern.permute.xlu0 0
        %501 = vperm.xlu0 %500, %v463
        %v502 = vpop.permute.xlu0 %501
        %v512 = vunpack.c.l.b16 %v444
        %v513 = vunpack.c.l.b16 %v445
        %v514 = vunpack.c.l.b16 %v446
        %v515 = vunpack.c.l.b16 %v447
        %v516 = vunpack.c.l.b16 %v448
        %v517 = vunpack.c.l.b16 %v449
        %v518 = vunpack.c.l.b16 %v450
        %v519 = vunpack.c.l.b16 %v451
        %v520 = vpack.c.b16 %v513, %v512
        %v521 = vpack.c.b16 %v515, %v514
        %v522 = vpack.c.b16 %v517, %v516
        %v523 = vpack.c.b16 %v519, %v518
        %vm524 = vcmask 523264
        %v526 = vsel %vm524, %v520, 0
        %v529 = vsel %vm524, %v521, 0
        %v532 = vsel %vm524, %v522, 0
        %v535 = vsel %vm524, %v523, 0
        %537 = vmatprep.subr.bf16.mxu0 0
        %538 = vmatpush1.bf16.msra.mxu0 0
        %539 = vmatprep.subr.bf16.mxu0 0
        %540 = vmatpush1.bf16.msra.mxu0 0
        %541 = vmatprep.subr.bf16.mxu0 0
        %542 = vmatpush1.bf16.msra.mxu0 0
        %543 = vmatprep.subr.bf16.mxu0 0
        %544 = vmatpush1.bf16.msra.mxu0 0
        %545 = vmatprep.subr.bf16.mxu0 0
        %546 = vmatpush1.bf16.msra.mxu0 %v455
        %547 = vmatprep.subr.bf16.mxu0 0
        %548 = vmatpush1.bf16.msra.mxu0 %v454
        %549 = vmatprep.subr.bf16.mxu0 0
        %550 = vmatpush1.bf16.msra.mxu0 %v453
        %551 = vmatprep.subr.bf16.mxu0 0
        %552 = vmatpush1.bf16.msra.mxu0 %v452
        %553 = vmatprep.subr.bf16.mxu0 0
        %554 = vmatpush2.bf16.msra.mxu0 0
        %555 = vmatprep.subr.bf16.mxu0 0
        %556 = vmatpush2.bf16.msra.mxu0 0
        %557 = vmatprep.subr.bf16.mxu0 0
        %558 = vmatpush2.bf16.msra.mxu0 0
        %559 = vmatprep.subr.bf16.mxu0 0
        %560 = vmatpush2.bf16.msra.mxu0 0
        %561 = vmatprep.subr.bf16.mxu0 0
        %562 = vmatpush2.bf16.msra.mxu0 0
        %563 = vmatprep.subr.bf16.mxu0 0
        %564 = vmatpush2.bf16.msra.mxu0 0
        %565 = vmatprep.subr.bf16.mxu0 0
        %566 = vmatpush2.bf16.msra.mxu0 0
        %567 = vmatprep.subr.bf16.mxu0 0
        %568 = vmatpush2.bf16.msra.mxu0 0
        %569 = vmatprep.mubr.bf16.mxu0 0
        %570 = vmatmul.mubr.bf16.gmra.mxu0 %v526
        %v571 = vpop.f32.mrf.mxu0
        %v572 = vadd.f32 %v467, %v571
        %v573 = vpop.f32.mrf.mxu0
        %v574 = vpop.f32.mrf.mxu0
        %v575 = vadd.f32 %v472, %v574
        %v576 = vpop.f32.mrf.mxu0
        %577 = vmatprep.mubr.bf16.mxu0 0
        %578 = vmatmul.mubr.bf16.gmra.mxu0 %v529
        %v579 = vpop.f32.mrf.mxu0
        %v580 = vadd.f32 %v477, %v579
        %v581 = vpop.f32.mrf.mxu0
        %v582 = vpop.f32.mrf.mxu0
        %v583 = vadd.f32 %v482, %v582
        %v584 = vpop.f32.mrf.mxu0
        %585 = vmatprep.mubr.bf16.mxu0 0
        %586 = vmatmul.mubr.bf16.gmra.mxu0 %v532
        %v587 = vpop.f32.mrf.mxu0
        %v588 = vadd.f32 %v487, %v587
        %v589 = vpop.f32.mrf.mxu0
        %v590 = vpop.f32.mrf.mxu0
        %v591 = vadd.f32 %v492, %v590
        %v592 = vpop.f32.mrf.mxu0
        %593 = vmatprep.mubr.bf16.mxu0 0
        %594 = vmatmul.mubr.bf16.gmra.mxu0 %v535
        %v595 = vpop.f32.mrf.mxu0
        %v596 = vadd.f32 %v497, %v595
        %v597 = vpop.f32.mrf.mxu0
        %v598 = vpop.f32.mrf.mxu0
        %v599 = vadd.f32 %v502, %v598
        %v600 = vpop.f32.mrf.mxu0
        %601 = vdwg.mxu0
        %v602 = vmax.f32 %v572, 0.0
        %v603 = vmax.f32 %v575, 0.0
        %v604 = vmax.f32 %v580, 0.0
        %v605 = vmax.f32 %v583, 0.0
        %v606 = vmax.f32 %v588, 0.0
        %v607 = vmax.f32 %v591, 0.0
        %v608 = vmax.f32 %v596, 0.0
        %v609 = vmax.f32 %v599, 0.0
        %v610 = vld [vmem:[%s5] sm:$0x1]
        %v611 = vpack.c.bf16 %v603, %v602
        %v612 = vpack.c.bf16 %v605, %v604
        %v613 = vpack.c.bf16 %v607, %v606
        %v614 = vpack.c.bf16 %v609, %v608
        %v615 = vld [vmem:[#allocation2] sm:$0x1]
        %617 = vset.pattern.permute.xlu0 0
        %618 = vperm.xlu0 %617, %v615
        %v619 = vpop.permute.xlu0 %618
        %v621 = vlaneseq
        %v622 = vshrl.u32 %v621, 7
        %v623 = vsub.s32 0, %v622
        %v624 = vrot.slane %v619, %v623
        %v626 = vsel %vm524, %v610, 0
        %628 = vmatprep.subr.bf16.mxu0 0
        %629 = vmatpush1.bf16.msra.mxu0 0
        %630 = vmatprep.subr.bf16.mxu0 0
        %631 = vmatpush1.bf16.msra.mxu0 0
        %632 = vmatprep.subr.bf16.mxu0 0
        %633 = vmatpush1.bf16.msra.mxu0 0
        %634 = vmatprep.subr.bf16.mxu0 0
        %635 = vmatpush1.bf16.msra.mxu0 0
        %636 = vmatprep.subr.bf16.mxu0 0
        %637 = vmatpush1.bf16.msra.mxu0 %v614
        %638 = vmatprep.subr.bf16.mxu0 0
        %639 = vmatpush1.bf16.msra.mxu0 %v613
        %640 = vmatprep.subr.bf16.mxu0 0
        %641 = vmatpush1.bf16.msra.mxu0 %v612
        %642 = vmatprep.subr.bf16.mxu0 0
        %643 = vmatpush1.bf16.msra.mxu0 %v611
        %644 = vmatprep.subr.bf16.mxu0 0
        %645 = vmatpush2.bf16.msra.mxu0 0
        %646 = vmatprep.subr.bf16.mxu0 0
        %647 = vmatpush2.bf16.msra.mxu0 0
        %648 = vmatprep.subr.bf16.mxu0 0
        %649 = vmatpush2.bf16.msra.mxu0 0
        %650 = vmatprep.subr.bf16.mxu0 0
        %651 = vmatpush2.bf16.msra.mxu0 0
        %652 = vmatprep.subr.bf16.mxu0 0
        %653 = vmatpush2.bf16.msra.mxu0 0
        %654 = vmatprep.subr.bf16.mxu0 0
        %655 = vmatpush2.bf16.msra.mxu0 0
        %656 = vmatprep.subr.bf16.mxu0 0
        %657 = vmatpush2.bf16.msra.mxu0 0
        %658 = vmatprep.subr.bf16.mxu0 0
        %659 = vmatpush2.bf16.msra.mxu0 0
        %660 = vmatprep.mubr.bf16.mxu0 0
        %661 = vmatmul.mubr.bf16.gmra.mxu0 %v626
        %v662 = vpop.f32.mrf.mxu0
        %v663 = vadd.f32 %v624, %v662
        %v664 = vpop.f32.mrf.mxu0
        %v665 = vpop.f32.mrf.mxu0
        %v666 = vpop.f32.mrf.mxu0
        %667 = vdwg.mxu0
        %668 = vst [vmem:[%s270] sm:$0x1] %v663
        %s669 = sand.u32 %s183, 1
        %s670 = scalar_lea.sflag [#allocation4], %s669
        %s671 = sand.u32 %s183, 1
        %s672 = scalar_lea.vmem [#allocation3], %s671
        // Predicated region
        $region49: #{tpu_custom_call.1} parent=47 // pred_check
          %p673 = pneg %p193
        $region50: #{tpu_custom_call.1} parent=47 // pred_check_branch
          %675 = sbr.rel (%p673) target = $region52
        $region51: #{tpu_custom_call.1} parent=47 // pred_region
          %s677 = ssub.s32 16, 16
          %678 = vsyncadd %s670, %s677
          %s679 = smul.addr %s23, 16
          %s680 = scalar_lea.hbm %s7, %s679
          %s682 = sshll.u32 %s672, 4
          %s683 = int_to_ptr.vmem [resolvable:$true] %s682
          %685 = dma.vmem_to_hbm [thread:$0]  %s683, 16, %s680, %s670
        $region52: #{tpu_custom_call.1} parent=47 // pred_fallthru
          _
      $region48: #{tpu_custom_call.1} parent=5 // pred_fallthru
        _
      %p686 = scmp.le.s32.totalorder 2, %s18
      // Predicated region
      $region53: #{tpu_custom_call.1} parent=5 // pred_check
        %p687 = pneg %p686
      $region54: #{tpu_custom_call.1} parent=5 // pred_check_branch
        %689 = sbr.rel (%p687) target = $region56
      $region55: #{tpu_custom_call.1} parent=5 // pred_region
        %s690 = ssub.s32 %s18, 2
        // Predicated region
        $region57: #{tpu_custom_call.1} parent=55 // pred_check
          %p691 = pneg %p199
        $region58: #{tpu_custom_call.1} parent=55 // pred_check_branch
          %693 = sbr.rel (%p691) target = $region60
        $region59: #{tpu_custom_call.1} parent=55 // pred_region
          %s694 = sand.u32 %s184, 1
          %s695 = scalar_lea.sflag [#allocation4], %s694
          %s696 = sand.u32 %s184, 1
          %s697 = scalar_lea.vmem [#allocation3], %s696
          %698 = dma.done %s695, 16
        $region60: #{tpu_custom_call.1} parent=55 // pred_fallthru
          _
      $region56: #{tpu_custom_call.1} parent=5 // pred_fallthru
        _
    $region6: #{tpu_custom_call.1} parent=1 // loop_footer
      %s22 = sadd.s32 1, %s18
    $region7: #{tpu_custom_call.1} parent=1 // loop_footer_branch
      %17 = sbr.rel target = $region3
    $region8: #{tpu_custom_call.1} parent=1 // loop_exit
      _
    %699 = vsyncpa [#allocation4], 1
    %s700 = scalar_lea.sflag [#allocation4], 1
    %701 = vsyncpa %s700, 1

</llo_original>
